<compile_context>
chip_gen: v6e
topology: v6e:2x2x1
jax: 0.10.0
libtpu: 0.0.40
codegen_flags: <defaults>
</compile_context>

<pallas_src>
import functools

import jax
import jax.numpy as jnp
from jax import lax
from jax.experimental import pallas as pl
from jax.experimental.pallas import tpu as pltpu

EPSILON = 1e-7
BETA = 2.0
LANES = 128
NUM_CORES = 2      # leading "parallel" grid axis (v7x megacore split)
STAT_ROWS = 8      # per-core accumulator slab rows (sublane-tile multiple)


def _fbeta_stats_kernel(n_valid_ref, d_ref, y_ref, out_ref, *,
                        block_rows, blocks_per_core):
    """Accumulates per-lane partial stats for the 2-class F-beta loss.

    d_ref   : (block_rows, 128) float  logit difference  l1 - l0 (pad = 0)
    y_ref   : (block_rows, 128) bf16   labels in {0, 1}  (pad = 0)
    out_ref : (STAT_ROWS, 128)  f32    row 0 = sum(y1*p1), 1 = sum(p1), 2 = sum(y1)
    """
    c = pl.program_id(0)   # TensorCore split (parallel)
    i = pl.program_id(1)   # streaming axis (arbitrary)

    @pl.when(i == 0)
    def _init():
        out_ref[...] = jnp.zeros_like(out_ref)

    n_valid = n_valid_ref[0]
    d = d_ref[...].astype(jnp.float32)
    y1 = y_ref[...].astype(jnp.float32)              # padding already 0
    # sigmoid(d) == softmax([l0, l1])[:, 1]; tanh form = one EUP pass, no div.
    p1 = 0.5 * jnp.tanh(0.5 * d) + 0.5

    block_start = (c * blocks_per_core + i) * (block_rows * LANES)
    is_tail = block_start + block_rows * LANES > n_valid

    @pl.when(jnp.logical_not(is_tail))
    def _full_block():                                # fast path: no masking
        out_ref[0:1, :] += jnp.sum(y1 * p1, axis=0, keepdims=True)
        out_ref[1:2, :] += jnp.sum(p1, axis=0, keepdims=True)
        out_ref[2:3, :] += jnp.sum(y1, axis=0, keepdims=True)

    @pl.when(is_tail)
    def _tail_block():                                # only blocks touching padding
        row = lax.broadcasted_iota(jnp.int32, (block_rows, LANES), 0)
        lane = lax.broadcasted_iota(jnp.int32, (block_rows, LANES), 1)
        flat = block_start + row * LANES + lane
        mask = (flat < n_valid).astype(jnp.float32)
        p1m = mask * p1                               # padded d=0 -> p1=0.5 must vanish
        out_ref[0:1, :] += jnp.sum(y1 * p1m, axis=0, keepdims=True)
        out_ref[1:2, :] += jnp.sum(p1m, axis=0, keepdims=True)
        out_ref[2:3, :] += jnp.sum(y1, axis=0, keepdims=True)


@functools.partial(jax.jit, static_argnames=("block_rows", "downcast_diff"))
def fbeta_loss(y_pred, y_true, block_rows=4096, downcast_diff=False):
    """Pallas TPU implementation of Fbeta_Loss.forward.

    y_pred: (N, 2) float logits; y_true: (N,) int labels in {0, 1}.
    Returns scalar float32 loss.
    """
    assert y_pred.ndim == 2 and y_pred.shape[1] == 2
    assert y_true.ndim == 1 and y_true.shape[0] == y_pred.shape[0]
    n = y_pred.shape[0]

    # Single logit-difference stream instead of two logit streams.
    d = y_pred[:, 1] - y_pred[:, 0]
    if downcast_diff:
        d = d.astype(jnp.bfloat16)
    labels = y_true.astype(jnp.bfloat16)              # {0,1}; pad value 0

    # Lane-dense layout: (nrows, 128); nrows multiple of br * NUM_CORES.
    rows = max(1, -(-n // LANES))
    br = min(block_rows, -(-rows // 32) * 32)
    br = max(32, (br // 32) * 32)                     # bf16/int8 tile-safe
    nrows = -(-rows // (br * NUM_CORES)) * (br * NUM_CORES)
    pad = nrows * LANES - n
    d_p = jnp.pad(d, ((0, pad),)).reshape(nrows, LANES)
    y_p = jnp.pad(labels, ((0, pad),)).reshape(nrows, LANES)

    num_blocks = nrows // br
    blocks_per_core = num_blocks // NUM_CORES
    n_valid = jnp.asarray([n], dtype=jnp.int32)

    kernel = functools.partial(_fbeta_stats_kernel, block_rows=br,
                               blocks_per_core=blocks_per_core)
    stats = pl.pallas_call(
        kernel,
        out_shape=jax.ShapeDtypeStruct((NUM_CORES * STAT_ROWS, LANES), jnp.float32),
        grid_spec=pltpu.PrefetchScalarGridSpec(
            num_scalar_prefetch=1,
            grid=(NUM_CORES, blocks_per_core),
            in_specs=[
                pl.BlockSpec((br, LANES),
                             lambda c, i, n_ref: (c * blocks_per_core + i, 0)),
                pl.BlockSpec((br, LANES),
                             lambda c, i, n_ref: (c * blocks_per_core + i, 0)),
            ],
            out_specs=pl.BlockSpec((STAT_ROWS, LANES),
                                   lambda c, i, n_ref: (c, 0)),
        ),
        compiler_params=pltpu.CompilerParams(
            dimension_semantics=("parallel", "arbitrary")),
    )(n_valid, d_p, y_p)

    # Tiny finalize in plain JAX: combine cores/lanes, derive tp/fp/fn.
    sums = stats.reshape(NUM_CORES, STAT_ROWS, LANES).sum(axis=(0, 2))
    tp1, sum_p1, sum_y1 = sums[0], sums[1], sums[2]
    n_f = jnp.float32(n)
    tp0 = n_f - sum_y1 - sum_p1 + tp1                 # sum((1-y1)*(1-p1)) over valid
    tp = jnp.stack([tp0, tp1])
    fp = jnp.stack([(n_f - sum_p1) - tp0, sum_p1 - tp1])
    fn = jnp.stack([(n_f - sum_y1) - tp0, sum_y1 - tp1])
    beta2 = BETA * BETA
    precision = tp / (tp + fp + EPSILON)
    recall = tp / (tp + fn + EPSILON)
    fbeta = (1.0 + beta2) * precision * recall / (beta2 * precision + recall + EPSILON)
    fbeta = jnp.clip(fbeta, EPSILON, 1.0 - EPSILON)
    return 1.0 - jnp.mean(fbeta)


def _fbeta_loss_ref(y_pred, y_true):
    """Pure-JAX reference mirroring the PyTorch module."""
    y_true_oh = jax.nn.one_hot(y_true, 2, dtype=jnp.float32)
    y_pred_sm = jax.nn.softmax(y_pred.astype(jnp.float32), axis=1)
    tp = jnp.sum(y_true_oh * y_pred_sm, axis=0)
    fp = jnp.sum((1 - y_true_oh) * y_pred_sm, axis=0)
    fn = jnp.sum(y_true_oh * (1 - y_pred_sm), axis=0)
    beta2 = BETA * BETA
    precision = tp / (tp + fp + EPSILON)
    recall = tp / (tp + fn + EPSILON)
    fbeta = (1 + beta2) * (precision * recall) / (beta2 * precision + recall + EPSILON)
    fbeta = jnp.clip(fbeta, EPSILON, 1 - EPSILON)
    return 1 - jnp.mean(fbeta)


if __name__ == "__main__":
    key = jax.random.PRNGKey(0)
    k1, k2, k3, k4 = jax.random.split(key, 4)

    # Small shapes consistent with the module: (N, 2) logits, (N,) labels.
    N = 16
    y_pred = jax.random.normal(k1, (N, 2), dtype=jnp.float32)
    y_true = jax.random.randint(k2, (N,), 0, 2, dtype=jnp.int32)
    loss = fbeta_loss(y_pred, y_true)
    jax.block_until_ready(loss)
    ref = _fbeta_loss_ref(y_pred, y_true)
    assert jnp.allclose(loss, ref, atol=1e-5, rtol=1e-5), (loss, ref)

    # Multi-block grid: exercises per-core accumulation, the mask-free fast
    # path, the tail-masked block, and a fully-padded block.
    N2 = 16421
    y_pred2 = jax.random.normal(k3, (N2, 2), dtype=jnp.float32)
    y_true2 = jax.random.randint(k4, (N2,), 0, 2, dtype=jnp.int32)
    loss2 = fbeta_loss(y_pred2, y_true2, block_rows=32)
    jax.block_until_ready(loss2)
    ref2 = _fbeta_loss_ref(y_pred2, y_true2)
    assert jnp.allclose(loss2, ref2, atol=1e-4, rtol=1e-4), (loss2, ref2)

    print("KERNEL_OK")
</pallas_src>

<mosaic_0001>
module attributes {stable_mosaic.version = 11 : i64} {
  func.func @_fbeta_stats_kernel(%arg0: i32, %arg1: i32, %arg2: memref<1xi32, #tpu.memory_space<smem>>, %arg3: memref<32x128xf32, #tpu.memory_space<vmem>>, %arg4: memref<32x128xbf16, #tpu.memory_space<vmem>>, %arg5: memref<8x128xf32, #tpu.memory_space<vmem>>) attributes {dimension_semantics = [#tpu.dimension_semantics<parallel>, #tpu.dimension_semantics<arbitrary>], iteration_bounds = array<i64: 2, 1>, scalar_prefetch = 1 : i64, scratch_operands = 0 : i64, tpu.core_type = #tpu.core_type<tc>, window_params = [{transform_indices = @transform_0, window_bounds = array<i64: 32, 128>}, {transform_indices = @transform_1, window_bounds = array<i64: 32, 128>}, {transform_indices = @transform_2, window_bounds = array<i64: 8, 128>}]} {
    %c0_i32 = arith.constant 0 : i32
    %0 = arith.cmpi eq, %arg1, %c0_i32 : i32
    %1 = arith.extui %0 : i1 to i32
    %c0_i32_0 = arith.constant 0 : i32
    %2 = arith.cmpi ne, %1, %c0_i32_0 : i32
    scf.if %2 {
      %cst_10 = arith.constant 0.000000e+00 : f32
      %24 = vector.broadcast %cst_10 : f32 to vector<8x128xf32>
      %c0_11 = arith.constant 0 : index
      %c0_12 = arith.constant 0 : index
      %25 = vector.load %arg5[%c0_11, %c0_12] : memref<8x128xf32, #tpu.memory_space<vmem>>, vector<8x128xf32>
      tpu.vector_store %arg5[%c0_11, %c0_12], %24 {strides = array<i32>} : memref<8x128xf32, #tpu.memory_space<vmem>>, vector<8x128xf32>,
    } else {
    }
    %c0 = arith.constant 0 : index
    %3 = memref.load %arg2[%c0] : memref<1xi32, #tpu.memory_space<smem>>
    %c0_1 = arith.constant 0 : index
    %c0_2 = arith.constant 0 : index
    %4 = vector.load %arg3[%c0_1, %c0_2] : memref<32x128xf32, #tpu.memory_space<vmem>>, vector<32x128xf32>
    %c0_3 = arith.constant 0 : index
    %c0_4 = arith.constant 0 : index
    %5 = vector.load %arg4[%c0_3, %c0_4] : memref<32x128xbf16, #tpu.memory_space<vmem>>, vector<32x128xbf16>
    %6 = arith.extf %5 : vector<32x128xbf16> to vector<32x128xf32>
    %cst = arith.constant 5.000000e-01 : f32
    %7 = vector.broadcast %cst : f32 to vector<32x128xf32>
    %8 = arith.mulf %7, %4 : vector<32x128xf32>
    %9 = math.tanh %8 : vector<32x128xf32>
    %cst_5 = arith.constant 5.000000e-01 : f32
    %10 = vector.broadcast %cst_5 : f32 to vector<32x128xf32>
    %11 = arith.mulf %10, %9 : vector<32x128xf32>
    %cst_6 = arith.constant 5.000000e-01 : f32
    %12 = vector.broadcast %cst_6 : f32 to vector<32x128xf32>
    %13 = arith.addf %11, %12 : vector<32x128xf32>
    %c1_i32 = arith.constant 1 : i32
    %14 = arith.muli %arg0, %c1_i32 : i32
    %15 = arith.addi %14, %arg1 : i32
    %c4096_i32 = arith.constant 4096 : i32
    %16 = arith.muli %15, %c4096_i32 : i32
    %c4096_i32_7 = arith.constant 4096 : i32
    %17 = arith.addi %16, %c4096_i32_7 : i32
    %18 = arith.cmpi sgt, %17, %3 : i32
    %true = arith.constant true
    %19 = arith.xori %18, %true : i1
    %20 = arith.extui %19 : i1 to i32
    %c0_i32_8 = arith.constant 0 : i32
    %21 = arith.cmpi ne, %20, %c0_i32_8 : i32
    scf.if %21 {
      %c0_10 = arith.constant 0 : index
      %c0_11 = arith.constant 0 : index
      %24 = vector.load %arg5[%c0_10, %c0_11] : memref<8x128xf32, #tpu.memory_space<vmem>>, vector<1x128xf32>
      %25 = arith.mulf %6, %13 : vector<32x128xf32>
      %cst_12 = arith.constant dense<0.000000e+00> : vector<128xf32>
      %26 = vector.multi_reduction <add>, %25, %cst_12 [0] : vector<32x128xf32> to vector<128xf32>
      %27 = vector.shape_cast %26 : vector<128xf32> to vector<1x128xf32>
      %28 = arith.addf %24, %27 : vector<1x128xf32>
      %c0_13 = arith.constant 0 : index
      %c0_14 = arith.constant 0 : index
      %29 = vector.load %arg5[%c0_13, %c0_14] : memref<8x128xf32, #tpu.memory_space<vmem>>, vector<1x128xf32>
      tpu.vector_store %arg5[%c0_13, %c0_14], %28 {strides = array<i32>} : memref<8x128xf32, #tpu.memory_space<vmem>>, vector<1x128xf32>,
      %c1 = arith.constant 1 : index
      %c0_15 = arith.constant 0 : index
      %30 = vector.load %arg5[%c1, %c0_15] : memref<8x128xf32, #tpu.memory_space<vmem>>, vector<1x128xf32>
      %cst_16 = arith.constant dense<0.000000e+00> : vector<128xf32>
      %31 = vector.multi_reduction <add>, %13, %cst_16 [0] : vector<32x128xf32> to vector<128xf32>
      %32 = vector.shape_cast %31 : vector<128xf32> to vector<1x128xf32>
      %33 = arith.addf %30, %32 : vector<1x128xf32>
      %c1_17 = arith.constant 1 : index
      %c0_18 = arith.constant 0 : index
      %34 = vector.load %arg5[%c1_17, %c0_18] : memref<8x128xf32, #tpu.memory_space<vmem>>, vector<1x128xf32>
      tpu.vector_store %arg5[%c1_17, %c0_18], %33 {strides = array<i32>} : memref<8x128xf32, #tpu.memory_space<vmem>>, vector<1x128xf32>,
      %c2 = arith.constant 2 : index
      %c0_19 = arith.constant 0 : index
      %35 = vector.load %arg5[%c2, %c0_19] : memref<8x128xf32, #tpu.memory_space<vmem>>, vector<1x128xf32>
      %cst_20 = arith.constant dense<0.000000e+00> : vector<128xf32>
      %36 = vector.multi_reduction <add>, %6, %cst_20 [0] : vector<32x128xf32> to vector<128xf32>
      %37 = vector.shape_cast %36 : vector<128xf32> to vector<1x128xf32>
      %38 = arith.addf %35, %37 : vector<1x128xf32>
      %c2_21 = arith.constant 2 : index
      %c0_22 = arith.constant 0 : index
      %39 = vector.load %arg5[%c2_21, %c0_22] : memref<8x128xf32, #tpu.memory_space<vmem>>, vector<1x128xf32>
      tpu.vector_store %arg5[%c2_21, %c0_22], %38 {strides = array<i32>} : memref<8x128xf32, #tpu.memory_space<vmem>>, vector<1x128xf32>,
    } else {
    }
    %22 = arith.extui %18 : i1 to i32
    %c0_i32_9 = arith.constant 0 : i32
    %23 = arith.cmpi ne, %22, %c0_i32_9 : i32
    scf.if %23 {
      %24 = tpu.iota {dimensions = array<i32: 0>} : vector<32x128xi32>
      %25 = tpu.iota {dimensions = array<i32: 1>} : vector<32x128xi32>
      %c128_i32 = arith.constant 128 : i32
      %26 = vector.broadcast %c128_i32 : i32 to vector<32x128xi32>
      %27 = arith.muli %24, %26 : vector<32x128xi32>
      %28 = vector.broadcast %16 : i32 to vector<32x128xi32>
      %29 = arith.addi %28, %27 : vector<32x128xi32>
      %30 = arith.addi %29, %25 : vector<32x128xi32>
      %31 = vector.broadcast %3 : i32 to vector<32x128xi32>
      %32 = arith.cmpi slt, %30, %31 : vector<32x128xi32>
      %33 = arith.extui %32 : vector<32x128xi1> to vector<32x128xi32>
      %34 = arith.sitofp %33 : vector<32x128xi32> to vector<32x128xf32>
      %35 = arith.mulf %34, %13 : vector<32x128xf32>
      %c0_10 = arith.constant 0 : index
      %c0_11 = arith.constant 0 : index
      %36 = vector.load %arg5[%c0_10, %c0_11] : memref<8x128xf32, #tpu.memory_space<vmem>>, vector<1x128xf32>
      %37 = arith.mulf %6, %35 : vector<32x128xf32>
      %cst_12 = arith.constant dense<0.000000e+00> : vector<128xf32>
      %38 = vector.multi_reduction <add>, %37, %cst_12 [0] : vector<32x128xf32> to vector<128xf32>
      %39 = vector.shape_cast %38 : vector<128xf32> to vector<1x128xf32>
      %40 = arith.addf %36, %39 : vector<1x128xf32>
      %c0_13 = arith.constant 0 : index
      %c0_14 = arith.constant 0 : index
      %41 = vector.load %arg5[%c0_13, %c0_14] : memref<8x128xf32, #tpu.memory_space<vmem>>, vector<1x128xf32>
      tpu.vector_store %arg5[%c0_13, %c0_14], %40 {strides = array<i32>} : memref<8x128xf32, #tpu.memory_space<vmem>>, vector<1x128xf32>,
      %c1 = arith.constant 1 : index
      %c0_15 = arith.constant 0 : index
      %42 = vector.load %arg5[%c1, %c0_15] : memref<8x128xf32, #tpu.memory_space<vmem>>, vector<1x128xf32>
      %cst_16 = arith.constant dense<0.000000e+00> : vector<128xf32>
      %43 = vector.multi_reduction <add>, %35, %cst_16 [0] : vector<32x128xf32> to vector<128xf32>
      %44 = vector.shape_cast %43 : vector<128xf32> to vector<1x128xf32>
      %45 = arith.addf %42, %44 : vector<1x128xf32>
      %c1_17 = arith.constant 1 : index
      %c0_18 = arith.constant 0 : index
      %46 = vector.load %arg5[%c1_17, %c0_18] : memref<8x128xf32, #tpu.memory_space<vmem>>, vector<1x128xf32>
      tpu.vector_store %arg5[%c1_17, %c0_18], %45 {strides = array<i32>} : memref<8x128xf32, #tpu.memory_space<vmem>>, vector<1x128xf32>,
      %c2 = arith.constant 2 : index
      %c0_19 = arith.constant 0 : index
      %47 = vector.load %arg5[%c2, %c0_19] : memref<8x128xf32, #tpu.memory_space<vmem>>, vector<1x128xf32>
      %cst_20 = arith.constant dense<0.000000e+00> : vector<128xf32>
      %48 = vector.multi_reduction <add>, %6, %cst_20 [0] : vector<32x128xf32> to vector<128xf32>
      %49 = vector.shape_cast %48 : vector<128xf32> to vector<1x128xf32>
      %50 = arith.addf %47, %49 : vector<1x128xf32>
      %c2_21 = arith.constant 2 : index
      %c0_22 = arith.constant 0 : index
      %51 = vector.load %arg5[%c2_21, %c0_22] : memref<8x128xf32, #tpu.memory_space<vmem>>, vector<1x128xf32>
      tpu.vector_store %arg5[%c2_21, %c0_22], %50 {strides = array<i32>} : memref<8x128xf32, #tpu.memory_space<vmem>>, vector<1x128xf32>,
    } else {
    }
    return
  }
  func.func @transform_0(%arg0: i32, %arg1: i32, %arg2: memref<1xi32, #tpu.memory_space<smem>>) -> (i32, i32) {
    %c1_i32 = arith.constant 1 : i32
    %0 = arith.muli %arg0, %c1_i32 : i32
    %1 = arith.addi %0, %arg1 : i32
    %c0_i32 = arith.constant 0 : i32
    %c0_i32_0 = arith.constant 0 : i32
    return %1, %c0_i32 : i32, i32
  }
  func.func @transform_1(%arg0: i32, %arg1: i32, %arg2: memref<1xi32, #tpu.memory_space<smem>>) -> (i32, i32) {
    %c1_i32 = arith.constant 1 : i32
    %0 = arith.muli %arg0, %c1_i32 : i32
    %1 = arith.addi %0, %arg1 : i32
    %c0_i32 = arith.constant 0 : i32
    %c0_i32_0 = arith.constant 0 : i32
    return %1, %c0_i32 : i32, i32
  }
  func.func @transform_2(%arg0: i32, %arg1: i32, %arg2: memref<1xi32, #tpu.memory_space<smem>>) -> (i32, i32) {
    %c0_i32 = arith.constant 0 : i32
    %c0_i32_0 = arith.constant 0 : i32
    return %arg0, %c0_i32 : i32, i32
  }
}

</mosaic_0001>

<llo_original>
// kernel: fbeta_loss.1
$region0: #{fbeta_loss.1}
  #allocation0 [shape = 'u32[]', space=smem, size = 0x4, offset = 0x4, fixed_abs, tag = 'smem constant byte address 0x4 - core index']
  #allocation1 [shape = 'u32[144,128]{1,0:T(1,128)}', space=vmem, size = 0x12000, scoped, tag = 'internal scratch']
  #allocation2 [shape = 's32[1]{0}', space=sflag, size = 0x4, scoped, tag = 'scoped memory for fbeta_loss.1']
  #allocation3 [shape = 's32[1]{0:T(128)S(6)}', space=smem, size = 0x200, scoped, tag = 'prefetched SMEM operand 0']
  %s0 = inlined_call_operand.<no memory space> [shape: s32[1], index: 0, kind: input, shape index: {}]
  %s1 = inlined_call_operand.vmem [shape: f32[64,128], index: 1, kind: input, shape index: {}]
  %s2 = inlined_call_operand.vmem [shape: bf16[64,128], index: 2, kind: input, shape index: {}]
  %s3 = inlined_call_operand.vmem [shape: f32[16,128], index: 3, kind: output, shape index: {}]
  %s4 = sld [smem:[#allocation0]]
  $region53: #{fbeta_loss.1} parent=0
    _
  %s6 = ssub.s32 1, %s4
  %s7 = scalar_select 0, %s6, %s4
  %8 = sst [smem:[#allocation3]] %s0
  loop: start=0, step=1, limit=4
  $region2: #{fbeta_loss.1} parent=0 // loop_pre_header
    _
  $region3: #{fbeta_loss.1} parent=0 // loop_header
    %s10 = sphi 0, %s14
    %p11 = scmp.ge.s32.totalorder %s10, 4
    %s17 = sphi 0, %s29
    %s18 = sphi 0, %s25
    %s19 = sphi 0, %s17
    %s20 = sphi 0, %s18
    %s21 = sphi 0, %s19
    %s22 = sphi 0, %s20
    %s34 = sphi 0, %s36
    %s37 = sphi 0, %s34
    %s38 = sphi 0, %s37
    %s54 = sphi 0, %s38
    %s62 = sphi 0, %s64
    %s65 = sphi 0, %s62
    %s66 = sphi 0, %s65
    %s82 = sphi 0, %s66
    %s88 = sphi 0, %s90
    %s91 = sphi 0, %s88
    %s92 = sphi 0, %s91
    %s108 = sphi 0, %s92
  $region4: #{fbeta_loss.1} parent=0 // loop_header_branch
    %13 = sbr.rel (%p11) target = $region8
  $region5: #{fbeta_loss.1} parent=0 // loop_body
    %s15 = ssub.s32 %s10, 1
    %s16 = ssub.s32 %s10, 2
    %s23 = sadd.s32 1, %s18
    %p24 = scmp.ge.s32.totalorder %s23, 1
    %s25 = scalar_select %p24, 0, %s23
    %s26 = sadd.s32 1, %s17
    %s27 = scalar_select %p24, %s26, %s17
    %p28 = scmp.ge.s32.totalorder %s27, 2
    %s29 = scalar_select %p28, 0, %s27
    %s30 = sadd.s32 %s17, %s18
    %s31 = sadd.s32 %s29, %s25
    %s32 = ssub.s32 %s30, %s31
    %p33 = scmp.eq.s32.totalorder %s32, 0
    %s35 = sadd.s32 %s34, 1
    %s36 = scalar_select %p33, %s34, %s35
    %p39 = pneg %p33
    %p40 = scmp.eq.s32.totalorder %s10, 1
    %p41 = por %p39, %p40
    %p42 = scmp.ne.s32.totalorder %s34, %s37
    %p43 = scmp.eq.s32.totalorder %s10, 0
    %p44 = por %p42, %p43
    %p45 = scmp.ne.s32.totalorder %s34, %s37
    %p46 = scmp.eq.s32.totalorder %s15, 1
    %p47 = por %p45, %p46
    %p48 = scmp.ne.s32.totalorder %s37, %s38
    %p49 = scmp.eq.s32.totalorder %s15, 0
    %p50 = por %p48, %p49
    %p51 = scmp.ne.s32.totalorder %s37, %s38
    %p52 = scmp.eq.s32.totalorder %s16, 1
    %p53 = por %p51, %p52
    %p55 = scmp.ne.s32.totalorder %s38, %s54
    %p56 = scmp.eq.s32.totalorder %s16, 0
    %p57 = por %p55, %p56
    %s58 = sadd.s32 %s17, %s18
    %s59 = sadd.s32 %s29, %s25
    %s60 = ssub.s32 %s58, %s59
    %p61 = scmp.eq.s32.totalorder %s60, 0
    %s63 = sadd.s32 %s62, 1
    %s64 = scalar_select %p61, %s62, %s63
    %p67 = pneg %p61
    %p68 = scmp.eq.s32.totalorder %s10, 1
    %p69 = por %p67, %p68
    %p70 = scmp.ne.s32.totalorder %s62, %s65
    %p71 = scmp.eq.s32.totalorder %s10, 0
    %p72 = por %p70, %p71
    %p73 = scmp.ne.s32.totalorder %s62, %s65
    %p74 = scmp.eq.s32.totalorder %s15, 1
    %p75 = por %p73, %p74
    %p76 = scmp.ne.s32.totalorder %s65, %s66
    %p77 = scmp.eq.s32.totalorder %s15, 0
    %p78 = por %p76, %p77
    %p79 = scmp.ne.s32.totalorder %s65, %s66
    %p80 = scmp.eq.s32.totalorder %s16, 1
    %p81 = por %p79, %p80
    %p83 = scmp.ne.s32.totalorder %s66, %s82
    %p84 = scmp.eq.s32.totalorder %s16, 0
    %p85 = por %p83, %p84
    %s86 = ssub.s32 %s17, %s29
    %p87 = scmp.eq.s32.totalorder %s86, 0
    %s89 = sadd.s32 %s88, 1
    %s90 = scalar_select %p87, %s88, %s89
    %p93 = pneg %p87
    %p94 = scmp.eq.s32.totalorder %s10, 1
    %p95 = por %p93, %p94
    %p96 = scmp.ne.s32.totalorder %s88, %s91
    %p97 = scmp.eq.s32.totalorder %s10, 0
    %p98 = por %p96, %p97
    %p99 = scmp.ne.s32.totalorder %s88, %s91
    %p100 = scmp.eq.s32.totalorder %s15, 1
    %p101 = por %p99, %p100
    %p102 = scmp.ne.s32.totalorder %s91, %s92
    %p103 = scmp.eq.s32.totalorder %s15, 0
    %p104 = por %p102, %p103
    %p105 = scmp.ne.s32.totalorder %s91, %s92
    %p106 = scmp.eq.s32.totalorder %s16, 1
    %p107 = por %p105, %p106
    %p109 = scmp.ne.s32.totalorder %s92, %s108
    %p110 = scmp.eq.s32.totalorder %s16, 0
    %p111 = por %p109, %p110
    %p112 = scmp.le.s32.totalorder 1, %s10
    %p113 = scmp.lt.s32.totalorder %s10, 3
    %p114 = pnand %p112, %p113
    %p115 = pneg %p114
    // Predicated region
    $region9: #{fbeta_loss.1} parent=5 // pred_check
      _
    $region10: #{fbeta_loss.1} parent=5 // pred_check_branch
      %117 = sbr.rel (%p114) target = $region12
    $region11: #{fbeta_loss.1} parent=5 // pred_region
      %s118 = ssub.s32 %s10, 1
    $region12: #{fbeta_loss.1} parent=5 // pred_fallthru
      _
    %p119 = scmp.lt.s32.totalorder %s10, 2
    // Predicated region
    $region13: #{fbeta_loss.1} parent=5 // pred_check
      %p120 = pneg %p119
    $region14: #{fbeta_loss.1} parent=5 // pred_check_branch
      %122 = sbr.rel (%p120) target = $region16
    $region15: #{fbeta_loss.1} parent=5 // pred_region
      // Predicated region
      $region17: #{fbeta_loss.1} parent=15 // pred_check
        %p123 = pneg %p44
      $region18: #{fbeta_loss.1} parent=15 // pred_check_branch
        %125 = sbr.rel (%p123) target = $region20
      $region19: #{fbeta_loss.1} parent=15 // pred_region
        %s126 = sadd.s32 %s17, %s18
        %s127 = smul.u32 4, %s126
        %p128 = scmp.lt.s32.totalorder %s127, 7
        %s129 = scalar_select %p128, %s127, 7
        %s130 = smul.addr %s129, 8
        %s131 = scalar_lea.vmem %s1, %s130
        %s132 = sadd.s32 %s17, %s18
        %s133 = smul.u32 4, %s132
      $region20: #{fbeta_loss.1} parent=15 // pred_fallthru
        _
      // Predicated region
      $region21: #{fbeta_loss.1} parent=15 // pred_check
        %p134 = pneg %p72
      $region22: #{fbeta_loss.1} parent=15 // pred_check_branch
        %136 = sbr.rel (%p134) target = $region24
      $region23: #{fbeta_loss.1} parent=15 // pred_region
        %s137 = sadd.s32 %s17, %s18
        %s138 = smul.u32 4, %s137
        %p139 = scmp.lt.s32.totalorder %s138, 7
        %s140 = scalar_select %p139, %s138, 7
        %s141 = smul.addr %s140, 4
        %s142 = scalar_lea.vmem %s2, %s141
        %s143 = sadd.s32 %s17, %s18
        %s144 = smul.u32 4, %s143
      $region24: #{fbeta_loss.1} parent=15 // pred_fallthru
        _
    $region16: #{fbeta_loss.1} parent=5 // pred_fallthru
      _
    %p145 = scmp.le.s32.totalorder 1, %s10
    %p146 = scmp.lt.s32.totalorder %s10, 3
    %p147 = pnand %p145, %p146
    %p148 = pneg %p147
    // Predicated region
    $region25: #{fbeta_loss.1} parent=5 // pred_check
      _
    $region26: #{fbeta_loss.1} parent=5 // pred_check_branch
      %150 = sbr.rel (%p147) target = $region28
    $region27: #{fbeta_loss.1} parent=5 // pred_region
      %s151 = ssub.s32 %s10, 1
      %s152 = sadd.s32 %s19, %s20
      %s153 = smul.u32 4, %s152
      %p154 = scmp.lt.s32.totalorder %s153, 7
      %s155 = scalar_select %p154, %s153, 7
      %s156 = smul.addr %s155, 8
      %s157 = scalar_lea.vmem %s1, %s156
      %p158 = pneg %p50
      %p159 = pneg %p47
      %s160 = sadd.s32 %s19, %s20
      %s161 = smul.u32 4, %s160
      %p162 = scmp.lt.s32.totalorder %s161, 7
      %s163 = scalar_select %p162, %s161, 7
      %s164 = smul.addr %s163, 4
      %s165 = scalar_lea.vmem %s2, %s164
      %p166 = pneg %p78
      %p167 = pneg %p75
      %p168 = pneg %p104
      %p169 = pneg %p101
      %p170 = scmp.lt.s32.totalorder %s19, 1
      %s171 = scalar_select %p170, %s19, 1
      %s172 = smul.addr %s171, 8
      %s173 = scalar_lea.vmem %s3, %s172
      %s174 = sadd.s32 %s19, %s20
      %s175 = smul.u32 4, %s174
      %p176 = scmp.lt.s32.totalorder %s175, 7
      %s177 = scalar_select %p176, %s175, 7
      %s178 = smul.addr %s177, 8
      %s179 = scalar_lea.vmem %s1, %s178
      %s180 = sadd.s32 %s19, %s20
      %s181 = smul.u32 4, %s180
      %s182 = sadd.s32 %s19, %s20
      %s183 = smul.u32 4, %s182
      %p184 = scmp.lt.s32.totalorder %s183, 7
      %s185 = scalar_select %p184, %s183, 7
      %s186 = smul.addr %s185, 4
      %s187 = scalar_lea.vmem %s2, %s186
      %s188 = sadd.s32 %s19, %s20
      %s189 = smul.u32 4, %s188
      %p190 = scmp.lt.s32.totalorder %s19, 1
      %s191 = scalar_select %p190, %s19, 1
      %s192 = smul.addr %s191, 8
      %s193 = scalar_lea.vmem %s3, %s192
      %p194 = scmp.eq.s32.totalorder %s20, 0
      // Predicated region
      $region29: #{fbeta_loss.1} parent=27 // pred_check
        %p195 = pneg %p194
      $region30: #{fbeta_loss.1} parent=27 // pred_check_branch
        %197 = sbr.rel (%p195) target = $region32
      $region31: #{fbeta_loss.1} parent=27 // pred_region
        %198 = vst [vmem:[%s193] sm:$0xff] 0.0
      $region32: #{fbeta_loss.1} parent=27 // pred_fallthru
        _
      %s199 = sld [smem:[#allocation3]]
      %v200 = vld [vmem:[%s179] sm:$0xff]
      %v201 = vld [vmem:[%s179 + $0x8] sm:$0xff]
      %v202 = vld [vmem:[%s179 + $0x10] sm:$0xff]
      %v203 = vld [vmem:[%s179 + $0x18] sm:$0xff]
      %v204 = vld [vmem:[%s187] sm:$0xf]
      %v205 = vld [vmem:[%s187 + $0x4] sm:$0xf]
      %v206 = vld [vmem:[%s187 + $0x8] sm:$0xf]
      %v207 = vld [vmem:[%s187 + $0xc] sm:$0xf]
      %v208 = vunpack.c.l.bf16 %v204
      %v209 = vunpack.c.l.bf16 %v205
      %v210 = vunpack.c.l.bf16 %v206
      %v211 = vunpack.c.l.bf16 %v207
      %v212 = vmul.f32 %v200, 0.5
      %v213 = vmul.f32 %v201, 0.5
      %v214 = vmul.f32 %v202, 0.5
      %v215 = vmul.f32 %v203, 0.5
      %v216 = vtanh.pop %v212
      %v217 = vtanh.pop %v213
      %v218 = vtanh.pop %v214
      %v219 = vtanh.pop %v215
      %v220 = vmul.f32 %v216, 0.5
      %v221 = vmul.f32 %v217, 0.5
      %v222 = vmul.f32 %v218, 0.5
      %v223 = vmul.f32 %v219, 0.5
      %v224 = vadd.f32 %v220, 0.5
      %v225 = vadd.f32 %v221, 0.5
      %v226 = vadd.f32 %v222, 0.5
      %v227 = vadd.f32 %v223, 0.5
      %s228 = sadd.s32 %s19, %s20
      %s229 = smul.u32 %s228, 4096
      %s230 = sadd.s32 %s229, 4096
      %p231 = scmp.gt.s32.totalorder %s230, %s199
      %p232 = scmp.le.s32.totalorder %s230, %s199
      // Predicated region
      $region33: #{fbeta_loss.1} parent=27 // pred_check
        %p233 = pneg %p232
      $region34: #{fbeta_loss.1} parent=27 // pred_check_branch
        %235 = sbr.rel (%p233) target = $region36
      $region35: #{fbeta_loss.1} parent=27 // pred_region
        %v236 = vld [vmem:[%s193] sm:$0x1]
        %v237 = vmul.f32 %v208, %v224
        %v238 = vmul.f32 %v209, %v225
        %v239 = vmul.f32 %v210, %v226
        %v240 = vmul.f32 %v211, %v227
        %v241 = vadd.f32 %v237, %v238
        %v242 = vadd.f32 %v241, %v239
        %v243 = vadd.f32 %v242, %v240
        %v244 = vrot.slane %v243, 4
        %v245 = vadd.f32 %v243, %v244
        %v246 = vrot.slane %v245, 2
        %v247 = vadd.f32 %v245, %v246
        %v248 = vrot.slane %v247, 1
        %v249 = vadd.f32 %v247, %v248
        %v250 = vadd.f32 %v236, %v249
        %251 = vst [vmem:[%s193] sm:$0x1] %v250
        %v252 = vld [vmem:[%s193 + $0x1] sm:$0x1]
        %v253 = vadd.f32 %v224, %v225
        %v254 = vadd.f32 %v253, %v226
        %v255 = vadd.f32 %v254, %v227
        %v256 = vrot.slane %v255, 4
        %v257 = vadd.f32 %v255, %v256
        %v258 = vrot.slane %v257, 2
        %v259 = vadd.f32 %v257, %v258
        %v260 = vrot.slane %v259, 1
        %v261 = vadd.f32 %v259, %v260
        %v262 = vadd.f32 %v252, %v261
        %263 = vst [vmem:[%s193 + $0x1] sm:$0x1] %v262
        %v264 = vld [vmem:[%s193 + $0x2] sm:$0x1]
        %v265 = vadd.f32 %v208, %v209
        %v266 = vadd.f32 %v265, %v210
        %v267 = vadd.f32 %v266, %v211
        %v268 = vrot.slane %v267, 4
        %v269 = vadd.f32 %v267, %v268
        %v270 = vrot.slane %v269, 2
        %v271 = vadd.f32 %v269, %v270
        %v272 = vrot.slane %v271, 1
        %v273 = vadd.f32 %v271, %v272
        %v274 = vadd.f32 %v264, %v273
        %275 = vst [vmem:[%s193 + $0x2] sm:$0x1] %v274
      $region36: #{fbeta_loss.1} parent=27 // pred_fallthru
        _
      // Predicated region
      $region37: #{fbeta_loss.1} parent=27 // pred_check
        %p276 = pneg %p231
      $region38: #{fbeta_loss.1} parent=27 // pred_check_branch
        %278 = sbr.rel (%p276) target = $region40
      $region39: #{fbeta_loss.1} parent=27 // pred_region
        %v279 = vlaneseq
        %v280 = vshrl.u32 %v279, 7
        %v281 = vadd.s32 %v280, 8
        %v282 = vadd.s32 %v280, 16
        %v283 = vadd.s32 %v280, 24
        %v284 = vlaneseq
        %v285 = vand.u32 %v284, 127
        %v286 = vmul.u32 %v280, 128
        %v287 = vmul.u32 %v281, 128
        %v288 = vmul.u32 %v282, 128
        %v289 = vmul.u32 %v283, 128
        %v290 = vstv %s229
        %v291 = vadd.s32 %v290, %v286
        %v292 = vadd.s32 %v290, %v287
        %v293 = vadd.s32 %v290, %v288
        %v294 = vadd.s32 %v290, %v289
        %v295 = vadd.s32 %v291, %v285
        %v296 = vadd.s32 %v292, %v285
        %v297 = vadd.s32 %v293, %v285
        %v298 = vadd.s32 %v294, %v285
        %v299 = vstv %s199
        %vm300 = vcmp.lt.s32.totalorder %v295, %v299
        %vm301 = vcmp.lt.s32.totalorder %v296, %v299
        %vm302 = vcmp.lt.s32.totalorder %v297, %v299
        %vm303 = vcmp.lt.s32.totalorder %v298, %v299
        %v304 = vsel %vm300, 1, 0
        %v305 = vsel %vm301, 1, 0
        %v306 = vsel %vm302, 1, 0
        %v307 = vsel %vm303, 1, 0
        %v308 = vcvt.s32.f32 %v304
        %v309 = vcvt.s32.f32 %v305
        %v310 = vcvt.s32.f32 %v306
        %v311 = vcvt.s32.f32 %v307
        %v312 = vmul.f32 %v308, %v224
        %v313 = vmul.f32 %v309, %v225
        %v314 = vmul.f32 %v310, %v226
        %v315 = vmul.f32 %v311, %v227
        %v316 = vld [vmem:[%s193] sm:$0x1]
        %v317 = vmul.f32 %v208, %v312
        %v318 = vmul.f32 %v209, %v313
        %v319 = vmul.f32 %v210, %v314
        %v320 = vmul.f32 %v211, %v315
        %v321 = vadd.f32 %v317, %v318
        %v322 = vadd.f32 %v321, %v319
        %v323 = vadd.f32 %v322, %v320
        %v324 = vrot.slane %v323, 4
        %v325 = vadd.f32 %v323, %v324
        %v326 = vrot.slane %v325, 2
        %v327 = vadd.f32 %v325, %v326
        %v328 = vrot.slane %v327, 1
        %v329 = vadd.f32 %v327, %v328
        %v330 = vadd.f32 %v316, %v329
        %331 = vst [vmem:[%s193] sm:$0x1] %v330
        %v332 = vld [vmem:[%s193 + $0x1] sm:$0x1]
        %v333 = vadd.f32 %v312, %v313
        %v334 = vadd.f32 %v333, %v314
        %v335 = vadd.f32 %v334, %v315
        %v336 = vrot.slane %v335, 4
        %v337 = vadd.f32 %v335, %v336
        %v338 = vrot.slane %v337, 2
        %v339 = vadd.f32 %v337, %v338
        %v340 = vrot.slane %v339, 1
        %v341 = vadd.f32 %v339, %v340
        %v342 = vadd.f32 %v332, %v341
        %343 = vst [vmem:[%s193 + $0x1] sm:$0x1] %v342
        %v344 = vld [vmem:[%s193 + $0x2] sm:$0x1]
        %v345 = vadd.f32 %v208, %v209
        %v346 = vadd.f32 %v345, %v210
        %v347 = vadd.f32 %v346, %v211
        %v348 = vrot.slane %v347, 4
        %v349 = vadd.f32 %v347, %v348
        %v350 = vrot.slane %v349, 2
        %v351 = vadd.f32 %v349, %v350
        %v352 = vrot.slane %v351, 1
        %v353 = vadd.f32 %v351, %v352
        %v354 = vadd.f32 %v344, %v353
        %355 = vst [vmem:[%s193 + $0x2] sm:$0x1] %v354
      $region40: #{fbeta_loss.1} parent=27 // pred_fallthru
        _
      %p356 = scmp.lt.s32.totalorder %s19, 1
      %s357 = scalar_select %p356, %s19, 1
      %s358 = smul.addr %s357, 8
      %s359 = scalar_lea.vmem %s3, %s358
      // Predicated region
      $region41: #{fbeta_loss.1} parent=27 // pred_check
        %p360 = pneg %p101
      $region42: #{fbeta_loss.1} parent=27 // pred_check_branch
        %362 = sbr.rel (%p360) target = $region44
      $region43: #{fbeta_loss.1} parent=27 // pred_region
        _
      $region44: #{fbeta_loss.1} parent=27 // pred_fallthru
        _
    $region28: #{fbeta_loss.1} parent=5 // pred_fallthru
      _
    %p363 = scmp.le.s32.totalorder 2, %s10
    // Predicated region
    $region45: #{fbeta_loss.1} parent=5 // pred_check
      %p364 = pneg %p363
    $region46: #{fbeta_loss.1} parent=5 // pred_check_branch
      %366 = sbr.rel (%p364) target = $region48
    $region47: #{fbeta_loss.1} parent=5 // pred_region
      %s367 = ssub.s32 %s10, 2
      // Predicated region
      $region49: #{fbeta_loss.1} parent=47 // pred_check
        %p368 = pneg %p107
      $region50: #{fbeta_loss.1} parent=47 // pred_check_branch
        %370 = sbr.rel (%p368) target = $region52
      $region51: #{fbeta_loss.1} parent=47 // pred_region
        %p371 = scmp.lt.s32.totalorder %s21, 1
        %s372 = scalar_select %p371, %s21, 1
        %s373 = smul.addr %s372, 8
        %s374 = scalar_lea.vmem %s3, %s373
      $region52: #{fbeta_loss.1} parent=47 // pred_fallthru
        _
    $region48: #{fbeta_loss.1} parent=5 // pred_fallthru
      _
  $region6: #{fbeta_loss.1} parent=0 // loop_footer
    %s14 = sadd.s32 1, %s10
  $region7: #{fbeta_loss.1} parent=0 // loop_footer_branch
    %9 = sbr.rel target = $region3
  $region8: #{fbeta_loss.1} parent=0 // loop_exit
    _

</llo_original>
